<compile_context>
chip_gen: v7x
topology: tpu7x:2x2x1
jax: 0.10.0
libtpu: 0.0.40
codegen_flags: <defaults>
</compile_context>

<pallas_src>
import jax
import jax.numpy as jnp
from jax.experimental import pallas as pl
from jax.experimental.pallas import tpu as pltpu

_LANES = 128


def _swish_kernel(beta_ref, x_ref, o_ref):
    # beta_ref: (1,) scalar in SMEM; x_ref / o_ref: (block_rows, 128) VMEM tiles.
    beta = beta_ref[0]
    x = x_ref[...]
    o_ref[...] = (x * jax.nn.sigmoid(beta * x)).astype(o_ref.dtype)


def _tpu_vmem_capacity_bytes() -> int:
    """Physical VMEM per core; conservative (v7x) fallback if the query fails."""
    try:
        cap = getattr(pltpu.get_tpu_info(), "vmem_capacity_bytes", None)
        if cap:
            return int(cap)
    except Exception:
        pass
    return 64 << 20


def swish(x: jax.Array, beta: jax.Array, *, block_bytes: int | None = None) -> jax.Array:
    """Swish forward. x: any floating-point array, beta: shape-(1,) parameter."""
    if not jnp.issubdtype(x.dtype, jnp.floating):
        raise TypeError(f"swish expects a floating-point input, got {x.dtype}")

    orig_shape = x.shape
    dtype = x.dtype
    n = x.size
    itemsize = jnp.dtype(dtype).itemsize

    # Native packed sublane count for this dtype (f32 -> 8, bf16 -> 16).
    sublane = max(8, 32 // itemsize)

    flat = x.reshape(-1)
    n_main = (n // _LANES) * _LANES

    # Whole input smaller than one lane row: not worth a kernel launch.
    if n_main == 0:
        return (flat * jax.nn.sigmoid(beta[0] * flat)).astype(dtype).reshape(orig_shape)

    # --- generation-aware block / VMEM budget ---------------------------------
    vmem_cap = _tpu_vmem_capacity_bytes()
    if vmem_cap >= (100 << 20):        # v5e / v6e: 128 MiB physical VMEM
        vmem_limit_cap = 96 << 20
        default_block = 12 << 20
    else:                              # v7x: 64 MiB physical VMEM per TC
        vmem_limit_cap = 52 << 20
        default_block = 7 << 20
    if block_bytes is None:
        block_bytes = default_block
    # Clamp block so in+out double-buffered tiles (+8 MiB headroom) fit the limit.
    block_bytes = min(block_bytes, (vmem_limit_cap - (8 << 20)) // 4)
    block_bytes = max(block_bytes, sublane * _LANES * itemsize)

    # --- block rows ------------------------------------------------------------
    rows = n_main // _LANES
    rows_ceil = pl.cdiv(rows, sublane) * sublane
    target_rows = max(sublane, (block_bytes // (_LANES * itemsize)) // sublane * sublane)
    block_rows = min(target_rows, rows_ceil)

    # Keep >= ~8 blocks (>= 4 per TensorCore on v7x's 2 TCs) so double-buffered DMA
    # overlaps on both cores, but never shrink below ~1 MiB per block (already ~85%
    # of the HBM roofline at that size).
    floor_rows = max(sublane, ((1 << 20) // (_LANES * itemsize)) // sublane * sublane)
    desired_grid = 8
    if pl.cdiv(rows, block_rows) < desired_grid:
        want_rows = pl.cdiv(pl.cdiv(rows, desired_grid), sublane) * sublane
        block_rows = min(block_rows, max(floor_rows, want_rows))
    block_rows = max(sublane, min(block_rows, rows_ceil))
    grid_len = pl.cdiv(rows, block_rows)

    block_vmem = block_rows * _LANES * itemsize
    vmem_limit = int(min(vmem_limit_cap, max(32 << 20, 4 * block_vmem + (8 << 20))))

    x_main = flat if n_main == n else flat[:n_main]
    x2d = x_main.reshape(rows, _LANES)

    cost = pl.CostEstimate(
        flops=4 * n_main,
        transcendentals=n_main,
        bytes_accessed=2 * n_main * itemsize,
    )

    out2d = pl.pallas_call(
        _swish_kernel,
        out_shape=jax.ShapeDtypeStruct((rows, _LANES), dtype),
        grid_spec=pl.GridSpec(
            grid=(grid_len,),
            in_specs=[
                pl.BlockSpec(memory_space=pltpu.SMEM),                 # beta scalar
                pl.BlockSpec((block_rows, _LANES), lambda i: (i, 0)),  # x tile
            ],
            out_specs=pl.BlockSpec((block_rows, _LANES), lambda i: (i, 0)),
        ),
        compiler_params=pltpu.CompilerParams(
            dimension_semantics=("parallel",),
            vmem_limit_bytes=vmem_limit,
        ),
        cost_estimate=cost,
    )(beta, x2d)

    out_main = out2d.reshape(-1)
    if n_main != n:
        # Tiny (<128 element) ragged tail handled outside the kernel: cheaper than a
        # jnp.pad + slice round trip over the whole tensor.
        tail = flat[n_main:]
        out_tail = (tail * jax.nn.sigmoid(beta[0] * tail)).astype(dtype)
        out_flat = jnp.concatenate([out_main, out_tail])
    else:
        out_flat = out_main
    return out_flat.reshape(orig_shape)


if __name__ == "__main__":
    key = jax.random.PRNGKey(0)
    # NCHW input consistent with a FashionMNIST-style conv activation
    x = jax.random.normal(key, (2, 4, 16, 16), dtype=jnp.float32)

    # deterministic parameter init, matching nn.Parameter(torch.ones(1)) * beta(=1)
    beta = jnp.ones((1,), dtype=jnp.float32)

    y = swish(x, beta)
    jax.block_until_ready(y)

    # sanity check against plain-JAX reference (relative tolerance: EUP exp vs XLA)
    y_ref = x * jax.nn.sigmoid(beta[0] * x)
    assert y.shape == x.shape and y.dtype == x.dtype
    assert jnp.allclose(y, y_ref, rtol=1e-5, atol=1e-6)

    print("KERNEL_OK")
</pallas_src>

<mosaic_0001>
module attributes {stable_mosaic.version = 11 : i64} {
  func.func @_swish_kernel(%arg0: i32, %arg1: memref<1xf32, #tpu.memory_space<smem>>, %arg2: memref<16x128xf32, #tpu.memory_space<vmem>>, %arg3: memref<16x128xf32, #tpu.memory_space<vmem>>) attributes {dimension_semantics = [#tpu.dimension_semantics<parallel>], iteration_bounds = array<i64: 1>, scalar_prefetch = 0 : i64, scratch_operands = 0 : i64, tpu.core_type = #tpu.core_type<tc>, window_params = [{transform_indices = @transform_0, window_bounds = array<i64: 1>}, {transform_indices = @transform_1, window_bounds = array<i64: 16, 128>}, {transform_indices = @transform_2, window_bounds = array<i64: 16, 128>}]} {
    %c0 = arith.constant 0 : index
    %0 = memref.load %arg1[%c0] : memref<1xf32, #tpu.memory_space<smem>>
    %c0_0 = arith.constant 0 : index
    %c0_1 = arith.constant 0 : index
    %1 = vector.load %arg2[%c0_0, %c0_1] : memref<16x128xf32, #tpu.memory_space<vmem>>, vector<16x128xf32>
    %2 = vector.broadcast %0 : f32 to vector<16x128xf32>
    %3 = arith.mulf %2, %1 : vector<16x128xf32>
    %4 = arith.negf %3 : vector<16x128xf32>
    %5 = math.exp %4 : vector<16x128xf32>
    %cst = arith.constant 1.000000e+00 : f32
    %6 = vector.broadcast %cst : f32 to vector<16x128xf32>
    %7 = arith.addf %6, %5 : vector<16x128xf32>
    %8 = arith.divf %6, %7 : vector<16x128xf32>
    %9 = arith.mulf %1, %8 : vector<16x128xf32>
    %c0_2 = arith.constant 0 : index
    %c0_3 = arith.constant 0 : index
    %10 = vector.load %arg3[%c0_2, %c0_3] : memref<16x128xf32, #tpu.memory_space<vmem>>, vector<16x128xf32>
    tpu.vector_store %arg3[%c0_2, %c0_3], %9 {strides = array<i32>} : memref<16x128xf32, #tpu.memory_space<vmem>>, vector<16x128xf32>,
    return
  }
  func.func @transform_0(%arg0: i32) -> i32 {
    %c0_i32 = arith.constant 0 : i32
    %c0_i32_0 = arith.constant 0 : i32
    return %c0_i32 : i32
  }
  func.func @transform_1(%arg0: i32) -> (i32, i32) {
    %c0_i32 = arith.constant 0 : i32
    %c0_i32_0 = arith.constant 0 : i32
    return %arg0, %c0_i32 : i32, i32
  }
  func.func @transform_2(%arg0: i32) -> (i32, i32) {
    %c0_i32 = arith.constant 0 : i32
    %c0_i32_0 = arith.constant 0 : i32
    return %arg0, %c0_i32 : i32, i32
  }
}

</mosaic_0001>

<llo_original>
// kernel: tpu_custom_call.1
$region0: #{tpu_custom_call.1}
  #allocation0 [shape = 'u32[]', space=smem, size = 0x4, offset = 0x4, fixed_abs, tag = 'smem constant byte address 0x4 - core index']
  #allocation1 [shape = 'u32[144,128]{1,0:T(1,128)}', space=vmem, size = 0x12000, scoped, tag = 'internal scratch']
  #allocation2 [shape = 'f32[1]{0:T(128)S(6)}', space=smem, size = 0x200, scoped, tag = 'scoped memory for tpu_custom_call.1']
  %s0 = inlined_call_operand.<no memory space> [shape: f32[1], index: 0, kind: input, shape index: {}]
  %s1 = inlined_call_operand.hbm [shape: f32[16,128], index: 1, kind: input, shape index: {}]
  %s2 = inlined_call_operand.hbm [shape: f32[16,128], index: 2, kind: output, shape index: {}]
  %s3 = sld [smem:[#allocation0]]
  $region22: #{tpu_custom_call.1} parent=0
    _
  %s5 = ssub.s32 1, %s3
  %s6 = scalar_select 0, %s5, %s3
  %7 = sst [smem:[#allocation2]] %s0
  $region1: #{tpu_custom_call.1} parent=0
    #allocation3 [shape = 'u8[8192]{0}', space=vmem, size = 0x2000, scoped, tag = 'input window, operand 1, single buffered']
    #allocation4 [shape = 's32[1]{0}', space=sflag, size = 0x4, scoped, tag = 'scoped memory for tpu_custom_call.1']
    #allocation5 [shape = 's32[1]{0}', space=sflag, size = 0x4, scoped, tag = 'scoped memory for tpu_custom_call.1']
    #allocation6 [shape = 'u8[8192]{0}', space=vmem, size = 0x2000, scoped, tag = 'output window, operand 0, single buffered']
    %8 = vsyncpa [#allocation4], 0
    %9 = vsyncpa [#allocation5], 0
    // Predicated region
    $region2: #{tpu_custom_call.1} parent=1 // pred_check
      _
    $region3: #{tpu_custom_call.1} parent=1 // pred_check_branch
      %11 = sbr.rel (0) target = $region5
    $region4: #{tpu_custom_call.1} parent=1 // pred_region
      _
    $region5: #{tpu_custom_call.1} parent=1 // pred_fallthru
      _
    // Predicated region
    $region6: #{tpu_custom_call.1} parent=1 // pred_check
      _
    $region7: #{tpu_custom_call.1} parent=1 // pred_check_branch
      %13 = sbr.rel (0) target = $region9
    $region8: #{tpu_custom_call.1} parent=1 // pred_region
      %s15 = ssub.s32 256, 256
      %16 = vsyncadd [#allocation4], %s15
      %s17 = sshll.u32 [#allocation3], 4
      %s18 = int_to_ptr.vmem [resolvable:$true] %s17
      %23 = dma.hbm_to_vmem [thread:$0]  %s1, 256, %s18, [#allocation4], 128, 128, 8
    $region9: #{tpu_custom_call.1} parent=1 // pred_fallthru
      _
    // Predicated region
    $region10: #{tpu_custom_call.1} parent=1 // pred_check
      _
    $region11: #{tpu_custom_call.1} parent=1 // pred_check_branch
      %25 = sbr.rel (0) target = $region13
    $region12: #{tpu_custom_call.1} parent=1 // pred_region
      %26 = dma.done [#allocation4], 256
    $region13: #{tpu_custom_call.1} parent=1 // pred_fallthru
      _
    %s27 = sld [smem:[#allocation2]]
    %v28 = vld [vmem:[#allocation3] sm:$0xff]
    %v29 = vld [vmem:[#allocation3 + $0x8] sm:$0xff]
    %v30 = vstv %s27
    %v31 = vmul.f32 %v30, %v28
    %v32 = vmul.f32 %v30, %v29
    %v33 = vxor.u32 %v31, 2147483648
    %v34 = vxor.u32 %v32, 2147483648
    %v35 = vmul.f32 %v33, 1.442695
    %v36 = vpow.pop %v35
    %v37 = vmul.f32 %v34, 1.442695
    %v38 = vpow.pop %v37
    %v39 = vadd.f32 %v36, 1.0
    %v40 = vadd.f32 %v38, 1.0
    %v41 = vrcp.pop %v39
    %v42 = vmul.f32 1.0, %v41
    %v43 = vrcp.pop %v40
    %v44 = vmul.f32 1.0, %v43
    %v45 = vmul.f32 %v28, %v42
    %v46 = vmul.f32 %v29, %v44
    %47 = vst [vmem:[#allocation6] sm:$0xff] %v45
    %48 = vst [vmem:[#allocation6 + $0x8] sm:$0xff] %v46
    // Predicated region
    $region14: #{tpu_custom_call.1} parent=1 // pred_check
      _
    $region15: #{tpu_custom_call.1} parent=1 // pred_check_branch
      %50 = sbr.rel (0) target = $region17
    $region16: #{tpu_custom_call.1} parent=1 // pred_region
      %s52 = ssub.s32 256, 256
      %53 = vsyncadd [#allocation5], %s52
      %s54 = sshll.u32 [#allocation6], 4
      %s55 = int_to_ptr.vmem [resolvable:$true] %s54
      %60 = dma.vmem_to_hbm [thread:$0]  %s55, 256, %s2, [#allocation5], 128, 128, 8
    $region17: #{tpu_custom_call.1} parent=1 // pred_fallthru
      _
    // Predicated region
    $region18: #{tpu_custom_call.1} parent=1 // pred_check
      _
    $region19: #{tpu_custom_call.1} parent=1 // pred_check_branch
      %62 = sbr.rel (0) target = $region21
    $region20: #{tpu_custom_call.1} parent=1 // pred_region
      %63 = dma.done [#allocation5], 256
    $region21: #{tpu_custom_call.1} parent=1 // pred_fallthru
      _
    %64 = vsyncpa [#allocation4], 1
    %65 = vsyncpa [#allocation5], 1

</llo_original>
